<compile_context>
chip_gen: v6e
topology: v6e:2x2x1
jax: 0.10.0
libtpu: 0.0.40
codegen_flags: <defaults>
</compile_context>

<pallas_src>
import functools

import jax
import jax.numpy as jnp
from jax.experimental import pallas as pl
from jax.experimental.pallas import tpu as pltpu  # noqa: F401  (TPU backend)


_HO, _WO = 7, 8   # output spatial size fixed by the fold() in the PyTorch spec


def _round_up(x, m):
    return -(-x // m) * m


# ----------------------------- Pallas kernel ------------------------------- #

def _conv_im2col_kernel(x_ref, w_ref, o_ref, *, n, c_in, w_dim, kh, kw, l_pad):
    """Whole batch in one invocation: im2col patch + a single MXU dot.

    x_ref: (N, C_in, HWP)            flattened, right-padded input rows
    w_ref: (C_out, kh*kw*C_in)       dense-packed weights (one vreg)
    o_ref: (N, C_out, L_pad)         L_pad is a multiple of 128 (lane dense)
    """
    # Build the (kh*kw*C_in, N*L_pad) im2col patch with static shifted slices.
    # Row t*C_in + c of the patch is channel c of tap t = i*kw + j, matching
    # the dense weight packing below.
    batch_cols = []
    for b in range(n):
        tap_rows = []
        for t in range(kh * kw):
            i, j = divmod(t, kw)
            s = i * w_dim + j                      # static tap offset into H*W
            tap_rows.append(x_ref[b, :, s:s + l_pad])          # (C_in, L_pad)
        batch_cols.append(jnp.concatenate(tap_rows, axis=0))   # (K, L_pad)
    patch = jnp.concatenate(batch_cols, axis=1)                # (K, N*L_pad)

    # One (C_out, K) @ (K, N*L_pad) contraction, f32 accumulation on the MXU.
    out = jnp.dot(w_ref[...], patch, preferred_element_type=jnp.float32)

    # Lane-aligned (multiple-of-128) static slices -> unmasked lane-dense
    # stores of (C_out, L_pad) per batch element.
    for b in range(n):
        o_ref[b] = out[:, b * l_pad:(b + 1) * l_pad].astype(o_ref.dtype)


def _conv_pallas(x_flat_pad, w_dense, *, w_dim, kh, kw, l_pad):
    n, c_in, hwp = x_flat_pad.shape
    c_out, k_dim = w_dense.shape

    kernel = functools.partial(
        _conv_im2col_kernel,
        n=n, c_in=c_in, w_dim=w_dim, kh=kh, kw=kw, l_pad=l_pad)

    flops = 2 * n * c_out * k_dim * l_pad
    bytes_accessed = 4 * (x_flat_pad.size + w_dense.size + n * c_out * l_pad)

    return pl.pallas_call(
        kernel,
        out_shape=jax.ShapeDtypeStruct((n, c_out, l_pad), jnp.float32),
        grid=(1,),                                  # single step: whole batch
        in_specs=[
            pl.BlockSpec((n, c_in, hwp), lambda i: (0, 0, 0)),
            pl.BlockSpec((c_out, k_dim), lambda i: (0, 0)),
        ],
        out_specs=pl.BlockSpec((n, c_out, l_pad), lambda i: (0, 0, 0)),
        cost_estimate=pl.CostEstimate(
            flops=flops, transcendentals=0, bytes_accessed=bytes_accessed),
    )(x_flat_pad, w_dense)


# ------------------------------- JAX glue ---------------------------------- #

def _pack_weights_dense(w):
    """(C_out, C_in, kh, kw) -> dense (C_out, kh*kw*C_in), column = t*C_in + c."""
    c_out, c_in, kh, kw = w.shape
    return (jnp.transpose(w, (0, 2, 3, 1))
            .reshape(c_out, kh * kw * c_in)
            .astype(jnp.float32))


def _diy_conv2d_dense(inp, w_dense, *, kh, kw):
    n, c_in, h, w_dim = inp.shape
    c_out = w_dense.shape[0]
    ho, wo = _HO, _WO
    assert h - kh + 1 == ho and w_dim - kw + 1 == wo, "shapes must yield (7, 8)"

    hw = h * w_dim
    l_pad = _round_up(ho * w_dim, 128)               # lane-dense output width
    s_max = (kh - 1) * w_dim + (kw - 1)              # largest static tap shift
    hwp = _round_up(max(hw, s_max + l_pad), 128)     # padded input row length

    if inp.dtype != jnp.float32:
        inp = inp.astype(jnp.float32)
    # One reshape (free for contiguous NCHW) + one pad that simultaneously
    # covers the tap-shift overrun and lane-dense (128-multiple) input rows.
    x_flat_pad = jnp.pad(inp.reshape(n, c_in, hw),
                         ((0, 0), (0, 0), (0, hwp - hw)))

    out_full = _conv_pallas(x_flat_pad, w_dense,
                            w_dim=w_dim, kh=kh, kw=kw, l_pad=l_pad)

    # Invariant (documented): padded zero columns and full-width rows only
    # affect output columns with w_idx >= Wo or l >= Ho*W, which are cropped
    # here.  Valid outputs only read positions <= (H-1)*W + (W-1) < H*W.
    out = out_full[..., :ho * w_dim].reshape(n, c_out, ho, w_dim)[..., :wo]
    return out                                        # (N, C_out, 7, 8)


def diy_conv2d(inp, w):
    """JAX/Pallas equivalent of the PyTorch diy_conv2d (output spatial (7, 8))."""
    kh, kw = int(w.shape[-2]), int(w.shape[-1])
    return _diy_conv2d_dense(inp, _pack_weights_dense(w), kh=kh, kw=kw)


class DiyConv2d:
    def __init__(self, w):
        self.w = w
        self._kh, self._kw = int(w.shape[-2]), int(w.shape[-1])
        # Pack the weights once so the per-call path has zero weight-prep ops.
        self._w_dense = _pack_weights_dense(w)

    def __call__(self, inp):
        return _diy_conv2d_dense(inp, self._w_dense, kh=self._kh, kw=self._kw)


# --------------------------------- main ------------------------------------ #

if __name__ == "__main__":
    key = jax.random.PRNGKey(0)
    k_x, k_w = jax.random.split(key)

    # Small shapes consistent with the module: output spatial must be (7, 8).
    N, C_in, C_out = 2, 4, 8
    kh, kw = 3, 3
    H, W = 7 + kh - 1, 8 + kw - 1          # (9, 10)

    x = jax.random.normal(k_x, (N, C_in, H, W), dtype=jnp.float32)
    w = jax.random.normal(k_w, (C_out, C_in, kh, kw), dtype=jnp.float32)

    model = DiyConv2d(w)
    fwd = jax.jit(model.__call__)          # fuses the tiny wrapper reshapes
    out = jax.block_until_ready(fwd(x))
    assert out.shape == (N, C_out, 7, 8), out.shape

    # Reference check against XLA conv (same semantics: valid conv, stride 1).
    ref = jax.lax.conv_general_dilated(
        x, w, window_strides=(1, 1), padding="VALID",
        dimension_numbers=("NCHW", "OIHW", "NCHW"))
    assert jnp.allclose(out, ref, atol=1e-4, rtol=1e-4), \
        float(jnp.max(jnp.abs(out - ref)))

    print("KERNEL_OK")
</pallas_src>

<mosaic_0001>
module attributes {stable_mosaic.version = 11 : i64} {
  func.func @_conv_im2col_kernel(%arg0: i32, %arg1: memref<2x4x256xf32, #tpu.memory_space<vmem>>, %arg2: memref<8x36xf32, #tpu.memory_space<vmem>>, %arg3: memref<2x8x128xf32, #tpu.memory_space<vmem>>) attributes {dimension_semantics = [#tpu.dimension_semantics<arbitrary>], iteration_bounds = array<i64: 1>, scalar_prefetch = 0 : i64, scratch_operands = 0 : i64, tpu.core_type = #tpu.core_type<tc>, window_params = [{pipeline_mode = #tpu.pipeline_mode<synchronous>, transform_indices = @transform_0, window_bounds = array<i64: 2, 4, 256>}, {pipeline_mode = #tpu.pipeline_mode<synchronous>, transform_indices = @transform_1, window_bounds = array<i64: 8, 36>}, {pipeline_mode = #tpu.pipeline_mode<synchronous>, transform_indices = @transform_2, window_bounds = array<i64: 2, 8, 128>}]} {
    %c0 = arith.constant 0 : index
    %c0_0 = arith.constant 0 : index
    %c0_1 = arith.constant 0 : index
    %0 = vector.load %arg1[%c0, %c0_0, %c0_1] : memref<2x4x256xf32, #tpu.memory_space<vmem>>, vector<1x4x128xf32>
    %1 = vector.shape_cast %0 : vector<1x4x128xf32> to vector<4x128xf32>
    %c0_2 = arith.constant 0 : index
    %c0_3 = arith.constant 0 : index
    %c1 = arith.constant 1 : index
    %2 = vector.load %arg1[%c0_2, %c0_3, %c1] : memref<2x4x256xf32, #tpu.memory_space<vmem>>, vector<1x4x128xf32>
    %3 = vector.shape_cast %2 : vector<1x4x128xf32> to vector<4x128xf32>
    %c0_4 = arith.constant 0 : index
    %c0_5 = arith.constant 0 : index
    %c2 = arith.constant 2 : index
    %4 = vector.load %arg1[%c0_4, %c0_5, %c2] : memref<2x4x256xf32, #tpu.memory_space<vmem>>, vector<1x4x128xf32>
    %5 = vector.shape_cast %4 : vector<1x4x128xf32> to vector<4x128xf32>
    %c0_6 = arith.constant 0 : index
    %c0_7 = arith.constant 0 : index
    %c10 = arith.constant 10 : index
    %6 = vector.load %arg1[%c0_6, %c0_7, %c10] : memref<2x4x256xf32, #tpu.memory_space<vmem>>, vector<1x4x128xf32>
    %7 = vector.shape_cast %6 : vector<1x4x128xf32> to vector<4x128xf32>
    %c0_8 = arith.constant 0 : index
    %c0_9 = arith.constant 0 : index
    %c11 = arith.constant 11 : index
    %8 = vector.load %arg1[%c0_8, %c0_9, %c11] : memref<2x4x256xf32, #tpu.memory_space<vmem>>, vector<1x4x128xf32>
    %9 = vector.shape_cast %8 : vector<1x4x128xf32> to vector<4x128xf32>
    %c0_10 = arith.constant 0 : index
    %c0_11 = arith.constant 0 : index
    %c12 = arith.constant 12 : index
    %10 = vector.load %arg1[%c0_10, %c0_11, %c12] : memref<2x4x256xf32, #tpu.memory_space<vmem>>, vector<1x4x128xf32>
    %11 = vector.shape_cast %10 : vector<1x4x128xf32> to vector<4x128xf32>
    %c0_12 = arith.constant 0 : index
    %c0_13 = arith.constant 0 : index
    %c20 = arith.constant 20 : index
    %12 = vector.load %arg1[%c0_12, %c0_13, %c20] : memref<2x4x256xf32, #tpu.memory_space<vmem>>, vector<1x4x128xf32>
    %13 = vector.shape_cast %12 : vector<1x4x128xf32> to vector<4x128xf32>
    %c0_14 = arith.constant 0 : index
    %c0_15 = arith.constant 0 : index
    %c21 = arith.constant 21 : index
    %14 = vector.load %arg1[%c0_14, %c0_15, %c21] : memref<2x4x256xf32, #tpu.memory_space<vmem>>, vector<1x4x128xf32>
    %15 = vector.shape_cast %14 : vector<1x4x128xf32> to vector<4x128xf32>
    %c0_16 = arith.constant 0 : index
    %c0_17 = arith.constant 0 : index
    %c22 = arith.constant 22 : index
    %16 = vector.load %arg1[%c0_16, %c0_17, %c22] : memref<2x4x256xf32, #tpu.memory_space<vmem>>, vector<1x4x128xf32>
    %17 = vector.shape_cast %16 : vector<1x4x128xf32> to vector<4x128xf32>
    %18 = tpu.concatenate %1, %3, %5, %7, %9, %11, %13, %15, %17 in 0 : vector<4x128xf32>, vector<4x128xf32>, vector<4x128xf32>, vector<4x128xf32>, vector<4x128xf32>, vector<4x128xf32>, vector<4x128xf32>, vector<4x128xf32>, vector<4x128xf32> -> vector<36x128xf32>
    %c1_18 = arith.constant 1 : index
    %c0_19 = arith.constant 0 : index
    %c0_20 = arith.constant 0 : index
    %19 = vector.load %arg1[%c1_18, %c0_19, %c0_20] : memref<2x4x256xf32, #tpu.memory_space<vmem>>, vector<1x4x128xf32>
    %20 = vector.shape_cast %19 : vector<1x4x128xf32> to vector<4x128xf32>
    %c1_21 = arith.constant 1 : index
    %c0_22 = arith.constant 0 : index
    %c1_23 = arith.constant 1 : index
    %21 = vector.load %arg1[%c1_21, %c0_22, %c1_23] : memref<2x4x256xf32, #tpu.memory_space<vmem>>, vector<1x4x128xf32>
    %22 = vector.shape_cast %21 : vector<1x4x128xf32> to vector<4x128xf32>
    %c1_24 = arith.constant 1 : index
    %c0_25 = arith.constant 0 : index
    %c2_26 = arith.constant 2 : index
    %23 = vector.load %arg1[%c1_24, %c0_25, %c2_26] : memref<2x4x256xf32, #tpu.memory_space<vmem>>, vector<1x4x128xf32>
    %24 = vector.shape_cast %23 : vector<1x4x128xf32> to vector<4x128xf32>
    %c1_27 = arith.constant 1 : index
    %c0_28 = arith.constant 0 : index
    %c10_29 = arith.constant 10 : index
    %25 = vector.load %arg1[%c1_27, %c0_28, %c10_29] : memref<2x4x256xf32, #tpu.memory_space<vmem>>, vector<1x4x128xf32>
    %26 = vector.shape_cast %25 : vector<1x4x128xf32> to vector<4x128xf32>
    %c1_30 = arith.constant 1 : index
    %c0_31 = arith.constant 0 : index
    %c11_32 = arith.constant 11 : index
    %27 = vector.load %arg1[%c1_30, %c0_31, %c11_32] : memref<2x4x256xf32, #tpu.memory_space<vmem>>, vector<1x4x128xf32>
    %28 = vector.shape_cast %27 : vector<1x4x128xf32> to vector<4x128xf32>
    %c1_33 = arith.constant 1 : index
    %c0_34 = arith.constant 0 : index
    %c12_35 = arith.constant 12 : index
    %29 = vector.load %arg1[%c1_33, %c0_34, %c12_35] : memref<2x4x256xf32, #tpu.memory_space<vmem>>, vector<1x4x128xf32>
    %30 = vector.shape_cast %29 : vector<1x4x128xf32> to vector<4x128xf32>
    %c1_36 = arith.constant 1 : index
    %c0_37 = arith.constant 0 : index
    %c20_38 = arith.constant 20 : index
    %31 = vector.load %arg1[%c1_36, %c0_37, %c20_38] : memref<2x4x256xf32, #tpu.memory_space<vmem>>, vector<1x4x128xf32>
    %32 = vector.shape_cast %31 : vector<1x4x128xf32> to vector<4x128xf32>
    %c1_39 = arith.constant 1 : index
    %c0_40 = arith.constant 0 : index
    %c21_41 = arith.constant 21 : index
    %33 = vector.load %arg1[%c1_39, %c0_40, %c21_41] : memref<2x4x256xf32, #tpu.memory_space<vmem>>, vector<1x4x128xf32>
    %34 = vector.shape_cast %33 : vector<1x4x128xf32> to vector<4x128xf32>
    %c1_42 = arith.constant 1 : index
    %c0_43 = arith.constant 0 : index
    %c22_44 = arith.constant 22 : index
    %35 = vector.load %arg1[%c1_42, %c0_43, %c22_44] : memref<2x4x256xf32, #tpu.memory_space<vmem>>, vector<1x4x128xf32>
    %36 = vector.shape_cast %35 : vector<1x4x128xf32> to vector<4x128xf32>
    %37 = tpu.concatenate %20, %22, %24, %26, %28, %30, %32, %34, %36 in 0 : vector<4x128xf32>, vector<4x128xf32>, vector<4x128xf32>, vector<4x128xf32>, vector<4x128xf32>, vector<4x128xf32>, vector<4x128xf32>, vector<4x128xf32>, vector<4x128xf32> -> vector<36x128xf32>
    %38 = tpu.concatenate %18, %37 in 1 : vector<36x128xf32>, vector<36x128xf32> -> vector<36x256xf32>
    %c0_45 = arith.constant 0 : index
    %c0_46 = arith.constant 0 : index
    %39 = vector.load %arg2[%c0_45, %c0_46] : memref<8x36xf32, #tpu.memory_space<vmem>>, vector<8x36xf32>
    %cst = arith.constant dense<0.000000e+00> : vector<8x256xf32>
    %40 = tpu.matmul %39, %38, %cst {dimension_numbers = #tpu.dot_dimension_numbers<[1], [0], [0], [1], [0, 0, 1, 1], [], []>} : vector<8x36xf32>, vector<36x256xf32>, vector<8x256xf32> -> vector<8x256xf32>
    %41 = vector.extract_strided_slice %40 {offsets = [0, 0], sizes = [8, 128], strides = [1, 1]} : vector<8x256xf32> to vector<8x128xf32>
    %c0_47 = arith.constant 0 : index
    %c0_48 = arith.constant 0 : index
    %c0_49 = arith.constant 0 : index
    %42 = vector.load %arg3[%c0_47, %c0_48, %c0_49] : memref<2x8x128xf32, #tpu.memory_space<vmem>>, vector<1x8x128xf32>
    %43 = vector.shape_cast %42 : vector<1x8x128xf32> to vector<8x128xf32>
    %44 = vector.shape_cast %41 : vector<8x128xf32> to vector<1x8x128xf32>
    tpu.vector_store %arg3[%c0_47, %c0_48, %c0_49], %44 {strides = array<i32>} : memref<2x8x128xf32, #tpu.memory_space<vmem>>, vector<1x8x128xf32>,
    %45 = vector.extract_strided_slice %40 {offsets = [0, 128], sizes = [8, 128], strides = [1, 1]} : vector<8x256xf32> to vector<8x128xf32>
    %c1_50 = arith.constant 1 : index
    %c0_51 = arith.constant 0 : index
    %c0_52 = arith.constant 0 : index
    %46 = vector.load %arg3[%c1_50, %c0_51, %c0_52] : memref<2x8x128xf32, #tpu.memory_space<vmem>>, vector<1x8x128xf32>
    %47 = vector.shape_cast %46 : vector<1x8x128xf32> to vector<8x128xf32>
    %48 = vector.shape_cast %45 : vector<8x128xf32> to vector<1x8x128xf32>
    tpu.vector_store %arg3[%c1_50, %c0_51, %c0_52], %48 {strides = array<i32>} : memref<2x8x128xf32, #tpu.memory_space<vmem>>, vector<1x8x128xf32>,
    return
  }
  func.func @transform_0(%arg0: i32) -> (i32, i32, i32) {
    %c0_i32 = arith.constant 0 : i32
    %c0_i32_0 = arith.constant 0 : i32
    %c0_i32_1 = arith.constant 0 : i32
    %c0_i32_2 = arith.constant 0 : i32
    return %c0_i32, %c0_i32_0, %c0_i32_1 : i32, i32, i32
  }
  func.func @transform_1(%arg0: i32) -> (i32, i32) {
    %c0_i32 = arith.constant 0 : i32
    %c0_i32_0 = arith.constant 0 : i32
    %c0_i32_1 = arith.constant 0 : i32
    return %c0_i32, %c0_i32_0 : i32, i32
  }
  func.func @transform_2(%arg0: i32) -> (i32, i32, i32) {
    %c0_i32 = arith.constant 0 : i32
    %c0_i32_0 = arith.constant 0 : i32
    %c0_i32_1 = arith.constant 0 : i32
    %c0_i32_2 = arith.constant 0 : i32
    return %c0_i32, %c0_i32_0, %c0_i32_1 : i32, i32, i32
  }
}

</mosaic_0001>

<llo_original>
// kernel: a_call__.1
$region0: #{a_call__.1}
  #allocation0 [shape = 'u32[]', space=smem, size = 0x4, offset = 0x4, fixed_abs, tag = 'smem constant byte address 0x4 - core index']
  #allocation1 [shape = 'u32[144,128]{1,0:T(1,128)}', space=vmem, size = 0x12000, scoped, tag = 'internal scratch']
  %s0 = inlined_call_operand.vmem [shape: f32[2,4,256], index: 0, kind: input, shape index: {}]
  %s1 = inlined_call_operand.vmem [shape: f32[8,36], index: 1, kind: input, shape index: {}]
  %s2 = inlined_call_operand.vmem [shape: f32[2,8,128], index: 2, kind: output, shape index: {}]
  %s3 = sld [smem:[#allocation0]]
  $region18: #{a_call__.1} parent=0
    _
  %s5 = ssub.s32 1, %s3
  %s6 = scalar_select 0, %s5, %s3
  // Predicated region
  $region2: #{a_call__.1} parent=0 // pred_check
    _
  $region3: #{a_call__.1} parent=0 // pred_check_branch
    %8 = sbr.rel (0) target = $region5
  $region4: #{a_call__.1} parent=0 // pred_region
    _
  $region5: #{a_call__.1} parent=0 // pred_fallthru
    _
  // Predicated region
  $region6: #{a_call__.1} parent=0 // pred_check
    _
  $region7: #{a_call__.1} parent=0 // pred_check_branch
    %10 = sbr.rel (0) target = $region9
  $region8: #{a_call__.1} parent=0 // pred_region
    _
  $region9: #{a_call__.1} parent=0 // pred_fallthru
    _
  %v11 = vld [vmem:[%s0] sm:$0xf]
  %v12 = vld [vmem:[%s0] sm:$0xff]
  %v14 = vcombine.low %v12, %v12
  %15 = vrot.lane.b32.xlu0 %v14, 127
  %v16 = vpop.permute.xlu0 %15
  %17 = vrot.lane.b32.xlu0 %v12, 127
  %v18 = vpop.permute.xlu0 %17
  %vm19 = vcmask 1039360
  %v20 = vsel %vm19, %v16, %v18
  %v22 = vcombine.high %v12, %v12
  %23 = vrot.lane.b32.xlu0 %v12, 126
  %v24 = vpop.permute.xlu0 %23
  %25 = vrot.lane.b32.xlu0 %v22, 126
  %v26 = vpop.permute.xlu0 %25
  %vm27 = vcmask 1031168
  %v28 = vsel %vm27, %v24, %v26
  %30 = vrot.lane.b32.xlu0 %v14, 118
  %v31 = vpop.permute.xlu0 %30
  %32 = vrot.lane.b32.xlu0 %v12, 118
  %v33 = vpop.permute.xlu0 %32
  %vm34 = vcmask 965632
  %v35 = vsel %vm34, %v31, %v33
  %37 = vrot.lane.b32.xlu0 %v12, 117
  %v38 = vpop.permute.xlu0 %37
  %39 = vrot.lane.b32.xlu0 %v22, 117
  %v40 = vpop.permute.xlu0 %39
  %vm41 = vcmask 957440
  %v42 = vsel %vm41, %v38, %v40
  %44 = vrot.lane.b32.xlu0 %v14, 116
  %v45 = vpop.permute.xlu0 %44
  %46 = vrot.lane.b32.xlu0 %v12, 116
  %v47 = vpop.permute.xlu0 %46
  %vm48 = vcmask 949248
  %v49 = vsel %vm48, %v45, %v47
  %51 = vrot.lane.b32.xlu0 %v12, 108
  %v52 = vpop.permute.xlu0 %51
  %53 = vrot.lane.b32.xlu0 %v22, 108
  %v54 = vpop.permute.xlu0 %53
  %vm55 = vcmask 883712
  %v56 = vsel %vm55, %v52, %v54
  %58 = vrot.lane.b32.xlu0 %v14, 107
  %v59 = vpop.permute.xlu0 %58
  %60 = vrot.lane.b32.xlu0 %v12, 107
  %v61 = vpop.permute.xlu0 %60
  %vm62 = vcmask 875520
  %v63 = vsel %vm62, %v59, %v61
  %65 = vrot.lane.b32.xlu0 %v12, 106
  %v66 = vpop.permute.xlu0 %65
  %67 = vrot.lane.b32.xlu0 %v22, 106
  %v68 = vpop.permute.xlu0 %67
  %vm69 = vcmask 867328
  %v70 = vsel %vm69, %v66, %v68
  %vm71 = vcmask 1043456
  %v72 = vsel %vm71, %v11, %v20
  %v73 = vsel %vm71, %v28, %v35
  %v74 = vsel %vm71, %v42, %v49
  %v75 = vsel %vm71, %v56, %v63
  %s76 = scalar_lea.vmem %s0, 8
  %v77 = vld [vmem:[%s76] sm:$0xf]
  %v78 = vld [vmem:[%s76] sm:$0xff]
  %v80 = vcombine.low %v78, %v78
  %81 = vrot.lane.b32.xlu0 %v80, 127
  %v82 = vpop.permute.xlu0 %81
  %83 = vrot.lane.b32.xlu0 %v78, 127
  %v84 = vpop.permute.xlu0 %83
  %v85 = vsel %vm19, %v82, %v84
  %v87 = vcombine.high %v78, %v78
  %88 = vrot.lane.b32.xlu0 %v78, 126
  %v89 = vpop.permute.xlu0 %88
  %90 = vrot.lane.b32.xlu0 %v87, 126
  %v91 = vpop.permute.xlu0 %90
  %v92 = vsel %vm27, %v89, %v91
  %94 = vrot.lane.b32.xlu0 %v80, 118
  %v95 = vpop.permute.xlu0 %94
  %96 = vrot.lane.b32.xlu0 %v78, 118
  %v97 = vpop.permute.xlu0 %96
  %v98 = vsel %vm34, %v95, %v97
  %100 = vrot.lane.b32.xlu0 %v78, 117
  %v101 = vpop.permute.xlu0 %100
  %102 = vrot.lane.b32.xlu0 %v87, 117
  %v103 = vpop.permute.xlu0 %102
  %v104 = vsel %vm41, %v101, %v103
  %106 = vrot.lane.b32.xlu0 %v80, 116
  %v107 = vpop.permute.xlu0 %106
  %108 = vrot.lane.b32.xlu0 %v78, 116
  %v109 = vpop.permute.xlu0 %108
  %v110 = vsel %vm48, %v107, %v109
  %112 = vrot.lane.b32.xlu0 %v78, 108
  %v113 = vpop.permute.xlu0 %112
  %114 = vrot.lane.b32.xlu0 %v87, 108
  %v115 = vpop.permute.xlu0 %114
  %v116 = vsel %vm55, %v113, %v115
  %118 = vrot.lane.b32.xlu0 %v80, 107
  %v119 = vpop.permute.xlu0 %118
  %120 = vrot.lane.b32.xlu0 %v78, 107
  %v121 = vpop.permute.xlu0 %120
  %v122 = vsel %vm62, %v119, %v121
  %124 = vrot.lane.b32.xlu0 %v78, 106
  %v125 = vpop.permute.xlu0 %124
  %126 = vrot.lane.b32.xlu0 %v87, 106
  %v127 = vpop.permute.xlu0 %126
  %v128 = vsel %vm69, %v125, %v127
  %v129 = vsel %vm71, %v77, %v85
  %v130 = vsel %vm71, %v92, %v98
  %v131 = vsel %vm71, %v104, %v110
  %v132 = vsel %vm71, %v116, %v122
  %v133 = vld [vmem:[%s1] sm:$0xff]
  %vm134 = vcmask 293888
  %v136 = vsel %vm134, %v133, 0
  %v138 = vsel %vm71, %v70, 0
  %v140 = vsel %vm71, %v128, 0
  %142 = vmatprep.subr.mxu0 0.0
  %143 = vmatpush1.msra.mxu0 0.0
  %144 = vmatprep.subr.mxu0 0.0
  %145 = vmatpush1.msra.mxu0 0.0
  %146 = vmatprep.subr.mxu0 0.0
  %147 = vmatpush1.msra.mxu0 0.0
  %148 = vmatprep.subr.mxu0 0.0
  %149 = vmatpush1.msra.mxu0 0.0
  %150 = vmatprep.subr.mxu0 0.0
  %151 = vmatpush1.msra.mxu0 0.0
  %152 = vmatprep.subr.mxu0 0.0
  %153 = vmatpush1.msra.mxu0 0.0
  %154 = vmatprep.subr.mxu0 0.0
  %155 = vmatpush1.msra.mxu0 0.0
  %156 = vmatprep.subr.mxu0 0.0
  %157 = vmatpush1.msra.mxu0 0.0
  %158 = vmatprep.subr.mxu0 0.0
  %159 = vmatpush1.msra.mxu0 0.0
  %160 = vmatprep.subr.mxu0 0.0
  %161 = vmatpush1.msra.mxu0 0.0
  %162 = vmatprep.subr.mxu0 0.0
  %163 = vmatpush1.msra.mxu0 0.0
  %164 = vmatprep.subr.mxu0 %v140
  %165 = vmatpush1.msra.mxu0 %v138
  %166 = vmatprep.subr.mxu0 %v132
  %167 = vmatpush1.msra.mxu0 %v75
  %168 = vmatprep.subr.mxu0 %v131
  %169 = vmatpush1.msra.mxu0 %v74
  %170 = vmatprep.subr.mxu0 %v130
  %171 = vmatpush1.msra.mxu0 %v73
  %172 = vmatprep.subr.mxu0 %v129
  %173 = vmatpush1.msra.mxu0 %v72
  %174 = vmatprep.subr.mxu0 0.0
  %175 = vmatpush2.msra.mxu0 0.0
  %176 = vmatprep.subr.mxu0 0.0
  %177 = vmatpush2.msra.mxu0 0.0
  %178 = vmatprep.subr.mxu0 0.0
  %179 = vmatpush2.msra.mxu0 0.0
  %180 = vmatprep.subr.mxu0 0.0
  %181 = vmatpush2.msra.mxu0 0.0
  %182 = vmatprep.subr.mxu0 0.0
  %183 = vmatpush2.msra.mxu0 0.0
  %184 = vmatprep.subr.mxu0 0.0
  %185 = vmatpush2.msra.mxu0 0.0
  %186 = vmatprep.subr.mxu0 0.0
  %187 = vmatpush2.msra.mxu0 0.0
  %188 = vmatprep.subr.mxu0 0.0
  %189 = vmatpush2.msra.mxu0 0.0
  %190 = vmatprep.subr.mxu0 0.0
  %191 = vmatpush2.msra.mxu0 0.0
  %192 = vmatprep.subr.mxu0 0.0
  %193 = vmatpush2.msra.mxu0 0.0
  %194 = vmatprep.subr.mxu0 0.0
  %195 = vmatpush2.msra.mxu0 0.0
  %196 = vmatprep.subr.mxu0 0.0
  %197 = vmatpush2.msra.mxu0 0.0
  %198 = vmatprep.subr.mxu0 0.0
  %199 = vmatpush2.msra.mxu0 0.0
  %200 = vmatprep.subr.mxu0 0.0
  %201 = vmatpush2.msra.mxu0 0.0
  %202 = vmatprep.subr.mxu0 0.0
  %203 = vmatpush2.msra.mxu0 0.0
  %204 = vmatprep.subr.mxu0 0.0
  %205 = vmatpush2.msra.mxu0 0.0
  %206 = vmatprep.mubr.f32.mxu0 0.0
  %207 = vmatmul.mubr.f32.gmra.mxu0 %v136
  %v208 = vpop.f32.mrf.mxu0
  %v209 = vadd.f32 0.0, %v208
  %v210 = vpop.f32.mrf.mxu0
  %v211 = vadd.f32 0.0, %v210
  %212 = vdwg.mxu0
  %213 = vst [vmem:[%s2] sm:$0xff] %v209
  %s214 = scalar_lea.vmem %s2, 8
  %215 = vst [vmem:[%s214] sm:$0xff] %v211
  // Predicated region
  $region10: #{a_call__.1} parent=0 // pred_check
    _
  $region11: #{a_call__.1} parent=0 // pred_check_branch
    %217 = sbr.rel (0) target = $region13
  $region12: #{a_call__.1} parent=0 // pred_region
    _
  $region13: #{a_call__.1} parent=0 // pred_fallthru
    _
  // Predicated region
  $region14: #{a_call__.1} parent=0 // pred_check
    _
  $region15: #{a_call__.1} parent=0 // pred_check_branch
    %219 = sbr.rel (0) target = $region17
  $region16: #{a_call__.1} parent=0 // pred_region
    _
  $region17: #{a_call__.1} parent=0 // pred_fallthru
    _

</llo_original>
